<compile_context>
chip_gen: v7x
topology: tpu7x:2x2x1
jax: 0.10.0
libtpu: 0.0.40
codegen_flags: <defaults>
</compile_context>

<pallas_src>
import functools

import jax
import jax.numpy as jnp
from jax.experimental import pallas as pl
from jax.experimental.pallas import tpu as pltpu

_MiB = 1024 * 1024


def _gap_kernel(x_ref, o_ref, acc_ref, *, inv_hw):
    # x_ref: (tn, tc, s) input block; o_ref: (tn, tc); acc_ref: (tn, tc) f32.
    s = pl.program_id(2)

    @pl.when(s == 0)
    def _init():
        acc_ref[...] = jnp.zeros_like(acc_ref)

    acc_ref[...] += jnp.sum(x_ref[...].astype(jnp.float32), axis=-1)

    @pl.when(s == pl.num_programs(2) - 1)
    def _finalize():
        o_ref[...] = (acc_ref[...] * inv_hw).astype(o_ref.dtype)


def _device_kind():
    try:
        return jax.devices()[0].device_kind.lower()
    except Exception:
        return ""


def _vmem_budget_and_cap(kind):
    """(block budget inside the default scoped-VMEM limit, max vmem_limit)."""
    if "v7" in kind:
        # 32 MiB default scoped limit, only 64 MiB physical VMEM -> modest cap.
        return 26 * _MiB, 40 * _MiB
    if "v6" in kind:
        # 32 MiB default scoped limit, 128 MiB physical.
        return 26 * _MiB, 96 * _MiB
    if "v5" in kind and ("lite" in kind or "v5e" in kind):
        # 16 MiB default scoped limit, 128 MiB physical.
        return 13 * _MiB, 96 * _MiB
    # Unknown / older generations: stay conservative.
    return 13 * _MiB, 40 * _MiB


def _vmem_need(tn, tc, s, itemsize):
    """Estimated VMEM footprint of one pipelined step (double-buffered I/O)."""
    in_block = tn * tc * s * itemsize
    f32_tmp = tn * tc * s * 4 if itemsize < 4 else 0  # astype(float32) temp
    out_block = tn * tc * itemsize
    acc = tn * tc * 4
    return 2 * in_block + f32_tmp + 2 * out_block + acc


def _legal_tiles(dim, unit):
    """Tile sizes that evenly divide `dim`: the full extent or multiples of `unit`."""
    opts = {dim}
    t = unit
    while t < dim:
        if dim % t == 0:
            opts.add(t)
        t += unit
    return sorted(opts)


def _choose_tiling(N, C, HW, itemsize, budget):
    """Pick (tn, tc, s_chunk) for input blocks of shape (tn, tc, s_chunk)."""
    tns = _legal_tiles(N, 8)     # output sublane rule: multiple of 8 or full N
    tcs = _legal_tiles(C, 128)   # output lane rule: multiple of 128 or full C
    ss = _legal_tiles(HW, 128)   # input lane rule: multiple of 128 or full HW

    # Phase 1: keep the whole H*W reduction in a single block (contiguous DMA
    # rows, one cross-lane reduce per output element).  Maximize block size.
    best = None  # (score, tn, tc)
    for tn in tns:
        for tc in tcs:
            if _vmem_need(tn, tc, HW, itemsize) <= budget:
                score = (tn * tc, tn)
                if best is None or score > best[0]:
                    best = (score, tn, tc)
    if best is not None:
        return best[1], best[2], HW

    # Phase 2 (fallback): minimal (tn, tc), largest H*W chunk that fits, so the
    # strided DMA rows and the per-step cross-lane reduce stay amortized.
    tn, tc = tns[0], tcs[0]
    fitting = [s for s in ss if _vmem_need(tn, tc, s, itemsize) <= budget]
    s = max(fitting) if fitting else ss[0]
    return tn, tc, s


def _ensure_two_parallel_tiles(N, C, tn, tc, kind):
    """On v7x (2 TensorCores/chip) make sure the parallel grid has >= 2 steps."""
    if "v7" not in kind or (N // tn) * (C // tc) >= 2:
        return tn, tc
    smaller_tns = [t for t in _legal_tiles(N, 8) if t < tn]
    if smaller_tns:
        return max(smaller_tns), tc
    smaller_tcs = [t for t in _legal_tiles(C, 128) if t < tc]
    if smaller_tcs:
        return tn, max(smaller_tcs)
    return tn, tc


def global_avg_pool2d(x):
    """x: (N, C, H, W) -> (N, C, 1, 1), averaging over the spatial dims."""
    N, C, H, W = x.shape
    HW = H * W
    itemsize = jnp.dtype(x.dtype).itemsize

    # Free reshape for contiguous NCHW; makes H*W the lane axis.
    x2 = x.reshape(N, C, HW)

    kind = _device_kind()
    budget, cap = _vmem_budget_and_cap(kind)
    tn, tc, s = _choose_tiling(N, C, HW, itemsize, budget)
    tn, tc = _ensure_two_parallel_tiles(N, C, tn, tc, kind)

    grid = (N // tn, C // tc, HW // s)  # reduction (spatial) axis last

    # Raise the scoped-VMEM limit only if this tiling actually needs it.
    need = _vmem_need(tn, tc, s, itemsize)
    vmem_limit = None
    if need > budget:
        vmem_limit = int(min(need * 5 // 4, cap))

    cost = pl.CostEstimate(
        flops=N * C * HW,
        transcendentals=0,
        bytes_accessed=N * C * HW * itemsize + N * C * itemsize,
    )

    kernel = functools.partial(_gap_kernel, inv_hw=float(1.0 / HW))

    out2 = pl.pallas_call(
        kernel,
        out_shape=jax.ShapeDtypeStruct((N, C), x.dtype),
        grid_spec=pltpu.PrefetchScalarGridSpec(
            num_scalar_prefetch=0,
            grid=grid,  # (batch tiles, channel tiles, spatial chunks)
            in_specs=[pl.BlockSpec((tn, tc, s), lambda i, j, k: (i, j, k))],
            out_specs=pl.BlockSpec((tn, tc), lambda i, j, k: (i, j)),
            scratch_shapes=[pltpu.VMEM((tn, tc), jnp.float32)],
        ),
        compiler_params=pltpu.CompilerParams(
            dimension_semantics=("parallel", "parallel", "arbitrary"),
            vmem_limit_bytes=vmem_limit,
        ),
        cost_estimate=cost,
    )(x2)

    return out2.reshape(N, C, 1, 1)


if __name__ == "__main__":
    key = jax.random.PRNGKey(0)
    # Small NCHW input consistent with the module's forward.
    x = jax.random.normal(key, (2, 4, 16, 16), dtype=jnp.float32)

    out = global_avg_pool2d(x)
    out = jax.block_until_ready(out)

    # Reference check against plain JAX mean.
    ref = jnp.mean(x, axis=(2, 3), keepdims=True)
    assert out.shape == (2, 4, 1, 1), out.shape
    assert jnp.allclose(out, ref, atol=1e-5, rtol=1e-5), "mismatch vs reference"

    print("KERNEL_OK")
</pallas_src>

<mosaic_0001>
module attributes {stable_mosaic.version = 11 : i64} {
  func.func @_gap_kernel(%arg0: i32, %arg1: i32, %arg2: i32, %arg3: memref<2x4x256xf32, #tpu.memory_space<vmem>>, %arg4: memref<2x4xf32, #tpu.memory_space<vmem>>, %arg5: memref<2x4xf32, #tpu.memory_space<vmem>>) attributes {dimension_semantics = [#tpu.dimension_semantics<parallel>, #tpu.dimension_semantics<parallel>, #tpu.dimension_semantics<arbitrary>], iteration_bounds = array<i64: 1, 1, 1>, scalar_prefetch = 0 : i64, scratch_operands = 1 : i64, tpu.core_type = #tpu.core_type<tc>, window_params = [{transform_indices = @transform_0, window_bounds = array<i64: 2, 4, 256>}, {transform_indices = @transform_1, window_bounds = array<i64: 2, 4>}]} {
    %c0_i32 = arith.constant 0 : i32
    %0 = arith.cmpi eq, %arg2, %c0_i32 : i32
    %1 = arith.extui %0 : i1 to i32
    %c0_i32_0 = arith.constant 0 : i32
    %2 = arith.cmpi ne, %1, %c0_i32_0 : i32
    scf.if %2 {
      %cst_9 = arith.constant 0.000000e+00 : f32
      %11 = vector.broadcast %cst_9 : f32 to vector<2x4xf32>
      %c0_10 = arith.constant 0 : index
      %c0_11 = arith.constant 0 : index
      %12 = vector.load %arg5[%c0_10, %c0_11] : memref<2x4xf32, #tpu.memory_space<vmem>>, vector<2x4xf32>
      tpu.vector_store %arg5[%c0_10, %c0_11], %11 {strides = array<i32>} : memref<2x4xf32, #tpu.memory_space<vmem>>, vector<2x4xf32>,
    } else {
    }
    %c0 = arith.constant 0 : index
    %c0_1 = arith.constant 0 : index
    %3 = vector.load %arg5[%c0, %c0_1] : memref<2x4xf32, #tpu.memory_space<vmem>>, vector<2x4xf32>
    %c0_2 = arith.constant 0 : index
    %c0_3 = arith.constant 0 : index
    %c0_4 = arith.constant 0 : index
    %4 = vector.load %arg3[%c0_2, %c0_3, %c0_4] : memref<2x4x256xf32, #tpu.memory_space<vmem>>, vector<2x4x256xf32>
    %cst = arith.constant dense<0.000000e+00> : vector<2x4xf32>
    %5 = vector.multi_reduction <add>, %4, %cst [2] : vector<2x4x256xf32> to vector<2x4xf32>
    %6 = arith.addf %3, %5 : vector<2x4xf32>
    %c0_5 = arith.constant 0 : index
    %c0_6 = arith.constant 0 : index
    %7 = vector.load %arg5[%c0_5, %c0_6] : memref<2x4xf32, #tpu.memory_space<vmem>>, vector<2x4xf32>
    tpu.vector_store %arg5[%c0_5, %c0_6], %6 {strides = array<i32>} : memref<2x4xf32, #tpu.memory_space<vmem>>, vector<2x4xf32>,
    %c0_i32_7 = arith.constant 0 : i32
    %8 = arith.cmpi eq, %arg2, %c0_i32_7 : i32
    %9 = arith.extui %8 : i1 to i32
    %c0_i32_8 = arith.constant 0 : i32
    %10 = arith.cmpi ne, %9, %c0_i32_8 : i32
    scf.if %10 {
      %c0_9 = arith.constant 0 : index
      %c0_10 = arith.constant 0 : index
      %11 = vector.load %arg5[%c0_9, %c0_10] : memref<2x4xf32, #tpu.memory_space<vmem>>, vector<2x4xf32>
      %cst_11 = arith.constant 3.906250e-03 : f32
      %12 = vector.broadcast %cst_11 : f32 to vector<2x4xf32>
      %13 = arith.mulf %11, %12 : vector<2x4xf32>
      %c0_12 = arith.constant 0 : index
      %c0_13 = arith.constant 0 : index
      %14 = vector.load %arg4[%c0_12, %c0_13] : memref<2x4xf32, #tpu.memory_space<vmem>>, vector<2x4xf32>
      tpu.vector_store %arg4[%c0_12, %c0_13], %13 {strides = array<i32>} : memref<2x4xf32, #tpu.memory_space<vmem>>, vector<2x4xf32>,
    } else {
    }
    return
  }
  func.func @transform_0(%arg0: i32, %arg1: i32, %arg2: i32) -> (i32, i32, i32) {
    %c0_i32 = arith.constant 0 : i32
    return %arg0, %arg1, %arg2 : i32, i32, i32
  }
  func.func @transform_1(%arg0: i32, %arg1: i32, %arg2: i32) -> (i32, i32) {
    %c0_i32 = arith.constant 0 : i32
    return %arg0, %arg1 : i32, i32
  }
}

</mosaic_0001>

<llo_original>
// kernel: tpu_custom_call.1
$region0: #{tpu_custom_call.1}
  #allocation0 [shape = 'u32[]', space=smem, size = 0x4, offset = 0x4, fixed_abs, tag = 'smem constant byte address 0x4 - core index']
  #allocation1 [shape = 'u32[144,128]{1,0:T(1,128)}', space=vmem, size = 0x12000, scoped, tag = 'internal scratch']
  #allocation2 [shape = 'f32[2,4]{1,0:T(2,128)}', space=vmem, size = 0x400, scoped, tag = 'scratch operand']
  %s0 = inlined_call_operand.hbm [shape: f32[2,4,256], index: 0, kind: input, shape index: {}]
  %s1 = inlined_call_operand.hbm [shape: f32[2,4], index: 1, kind: output, shape index: {}]
  %s2 = sld [smem:[#allocation0]]
  $region26: #{tpu_custom_call.1} parent=0
    _
  %s4 = ssub.s32 1, %s2
  %s5 = scalar_select 0, %s4, %s2
  $region1: #{tpu_custom_call.1} parent=0
    #allocation3 [shape = 'u8[8192]{0}', space=vmem, size = 0x2000, scoped, tag = 'input window, operand 0, single buffered']
    #allocation4 [shape = 's32[1]{0}', space=sflag, size = 0x4, scoped, tag = 'scoped memory for tpu_custom_call.1']
    #allocation5 [shape = 's32[1]{0}', space=sflag, size = 0x4, scoped, tag = 'scoped memory for tpu_custom_call.1']
    #allocation6 [shape = 'u8[1024]{0}', space=vmem, size = 0x400, scoped, tag = 'output window, operand 0, single buffered']
    %6 = vsyncpa [#allocation4], 0
    %7 = vsyncpa [#allocation5], 0
    // Predicated region
    $region2: #{tpu_custom_call.1} parent=1 // pred_check
      _
    $region3: #{tpu_custom_call.1} parent=1 // pred_check_branch
      %9 = sbr.rel (0) target = $region5
    $region4: #{tpu_custom_call.1} parent=1 // pred_region
      %s11 = ssub.s32 256, 256
      %12 = vsyncadd [#allocation4], %s11
      %s13 = sshll.u32 [#allocation3], 4
      %s14 = int_to_ptr.vmem [resolvable:$true] %s13
      %19 = dma.hbm_to_vmem [thread:$0]  %s0, 256, %s14, [#allocation4], 128, 128, 8
    $region5: #{tpu_custom_call.1} parent=1 // pred_fallthru
      _
    // Predicated region
    $region6: #{tpu_custom_call.1} parent=1 // pred_check
      _
    $region7: #{tpu_custom_call.1} parent=1 // pred_check_branch
      %21 = sbr.rel (0) target = $region9
    $region8: #{tpu_custom_call.1} parent=1 // pred_region
      %22 = dma.done [#allocation4], 256
    $region9: #{tpu_custom_call.1} parent=1 // pred_fallthru
      _
    %p23 = scmp.eq.s32.totalorder 0, 0
    // Predicated region
    $region10: #{tpu_custom_call.1} parent=1 // pred_check
      %p24 = pneg %p23
    $region11: #{tpu_custom_call.1} parent=1 // pred_check_branch
      %26 = sbr.rel (%p24) target = $region13
    $region12: #{tpu_custom_call.1} parent=1 // pred_region
      %vm27 = vcmask 25600
      %28 = vst.msk [vmem:[#allocation2] sm:$0x3] %vm27, 0.0
    $region13: #{tpu_custom_call.1} parent=1 // pred_fallthru
      _
    %v29 = vld [vmem:[#allocation2] sm:$0x3]
    %v30 = vld [vmem:[#allocation3] sm:$0xff]
    %v31 = vld [vmem:[#allocation3 + $0x8] sm:$0xff]
    %v34 = vcombine.high %v30, %v30
    %v35 = vcombine.high %v31, %v31
    %vm38 = vcmask 1043456
    %v39 = vsel %vm38, %v30, 0.0
    %v40 = vsel %vm38, %v34, 0.0
    %v41 = vadd.f32 %v39, %v40
    %42 = vadd.xlane.f32.xlu0 %v41
    %v43 = vpop.xlane.xlu0 %42
    %v44 = vsel %vm38, %v31, 0.0
    %v45 = vsel %vm38, %v35, 0.0
    %v46 = vadd.f32 %v44, %v45
    %47 = vadd.xlane.f32.xlu0 %v46
    %v48 = vpop.xlane.xlu0 %47
    %v51 = vlaneseq
    %v52 = vand.u32 %v51, 127
    %v53 = vlaneseq
    %v54 = vshrl.u32 %v53, 7
    %v55 = vsub.s32 %v52, %v54
    %v56 = vrot.slane %v43, %v55
    %v57 = vlaneseq
    %v58 = vshrl.u32 %v57, 7
    %v59 = vsub.s32 %v52, %v58
    %v60 = vrot.slane %v48, %v59
    %vm61 = vcmask 1041409
    %v62 = vsel %vm61, %v60, %v56
    %v64 = vadd.f32 %v29, %v62
    %vm65 = vcmask 25600
    %66 = vst.msk [vmem:[#allocation2] sm:$0x3] %vm65, %v64
    // Predicated region
    $region14: #{tpu_custom_call.1} parent=1 // pred_check
      %p67 = pneg %p23
    $region15: #{tpu_custom_call.1} parent=1 // pred_check_branch
      %69 = sbr.rel (%p67) target = $region17
    $region16: #{tpu_custom_call.1} parent=1 // pred_region
      %v70 = vld [vmem:[#allocation2] sm:$0x3]
      %v71 = vmul.f32 %v70, 0.00390625
      %72 = vst.msk [vmem:[#allocation6] sm:$0x3] %vm65, %v71
    $region17: #{tpu_custom_call.1} parent=1 // pred_fallthru
      _
    // Predicated region
    $region18: #{tpu_custom_call.1} parent=1 // pred_check
      _
    $region19: #{tpu_custom_call.1} parent=1 // pred_check_branch
      %74 = sbr.rel (0) target = $region21
    $region20: #{tpu_custom_call.1} parent=1 // pred_region
      %s76 = ssub.s32 32, 32
      %77 = vsyncadd [#allocation5], %s76
      %s79 = sshll.u32 [#allocation6], 4
      %s80 = int_to_ptr.vmem [resolvable:$true] %s79
      %82 = dma.vmem_to_hbm [thread:$0]  %s80, 32, %s1, [#allocation5]
    $region21: #{tpu_custom_call.1} parent=1 // pred_fallthru
      _
    // Predicated region
    $region22: #{tpu_custom_call.1} parent=1 // pred_check
      _
    $region23: #{tpu_custom_call.1} parent=1 // pred_check_branch
      %84 = sbr.rel (0) target = $region25
    $region24: #{tpu_custom_call.1} parent=1 // pred_region
      %85 = dma.done [#allocation5], 32
    $region25: #{tpu_custom_call.1} parent=1 // pred_fallthru
      _
    %86 = vsyncpa [#allocation4], 1
    %87 = vsyncpa [#allocation5], 1

</llo_original>
